<compile_context>
chip_gen: v7x
topology: tpu7x:2x2x1
jax: 0.10.0
libtpu: 0.0.40
codegen_flags: <defaults>
</compile_context>

<pallas_src>
import jax
import jax.numpy as jnp
from jax.experimental import pallas as pl
from jax.experimental.pallas import tpu as pltpu

# ---- module geometry (from TaxiSimpleCNN.__init__) --------------------------
B = 8             # batch: one full sublane group per conv1 output position
NUM_OUT = 6       # taxi action space
W0, C0 = 5, 3     # input spatial / channels
C1, K1 = 10, 2    # conv1
C2, K2 = 20, 3    # conv2
W1 = W0 - K1 + 1  # 4
W2 = W1 - K2 + 1  # 2  (MaxPool2d(W2) pools the whole 2x2 map -> 1x1)
FC = 20           # hidden width of the linear head

EPS = 1e-5
NEG_SLOPE = 0.01  # nn.LeakyReLU default

# ---- single parameter-slab layout (P_ROWS x 20 lanes, f32) -------------------
KK1 = K1 * K1 * C0     # 12 : conv1 im2col depth
KK2 = K2 * K2 * C1     # 90 : conv2 im2col depth
R_W1 = 0               # (12, 10)  conv1 weight, row = (kh*K1+kw)*C0 + ci
R_W2 = 16              # (90, 20)  conv2 weight, row = (kh*K2+kw)*C1 + ci
R_W3 = 112             # (20, 20)  fc1 weight (in, out)
R_W4 = 136             # (20,  6)  fc2 weight (in, out)
R_B1, R_G1, R_BE1 = 160, 161, 162    # conv1 bias / BN2d(10) gamma / beta
R_B2, R_G2, R_BE2 = 163, 164, 165    # conv2 bias / BN2d(20) gamma / beta
R_B3, R_G3, R_BE3 = 166, 167, 168    # fc1 bias  / BN1d(20) gamma / beta
R_B4 = 169                           # fc2 bias
P_ROWS, P_COLS = 176, 20


def _leaky_relu(x):
    # max(x, 0.01*x): mul + max, no compare/select.
    return jnp.maximum(x, NEG_SLOPE * x)


def _bn_train(x, gamma, beta):
    """Training-mode BatchNorm folded into one scale/shift.

    Stats over rows (batch*spatial), channels on lanes; biased variance with a
    clamp against E[x^2]-mean^2 cancellation.  Row order is irrelevant, so the
    position-major activation layout does not change the statistics.
    """
    inv_n = 1.0 / x.shape[0]
    mean = jnp.sum(x, axis=0, keepdims=True) * inv_n
    meansq = jnp.sum(x * x, axis=0, keepdims=True) * inv_n
    var = jnp.maximum(meansq - mean * mean, 0.0)
    s = gamma * jax.lax.rsqrt(var + EPS)
    # TODO(synk): if XLU is still the binding slot after the layout fix, move
    # these two row-sums onto the MXU via ones-row matmuls
    # (jnp.dot(jnp.ones((1, n)), x)) to offload the cross-sublane reduce.
    return x * s + (beta - mean * s)


def taxi_cnn_kernel(xcol_ref, p_ref, out_ref):
    # ---- Conv2d(3 -> 10, k=2) as ONE im2col matmul: (16*B, 12) @ (12, 10).
    # Rows are position-major, batch-minor: row = (oh*W1 + ow)*B + b.
    w1 = p_ref[R_W1:R_W1 + KK1, 0:C1]
    h1 = jnp.dot(xcol_ref[...], w1, preferred_element_type=jnp.float32)
    h1 = h1 + p_ref[R_B1:R_B1 + 1, 0:C1]                       # bias epilogue
    h1 = _bn_train(h1, p_ref[R_G1:R_G1 + 1, 0:C1],
                   p_ref[R_BE1:R_BE1 + 1, 0:C1])               # BatchNorm2d(10)
    h1 = _leaky_relu(h1)                                       # LeakyReLU

    # ---- Conv2d(10 -> 20, k=3) as ONE im2col matmul: (4*B, 90) @ (90, 20).
    # Each tap = two contiguous, 8-row-aligned slices of h1 (out positions
    # (0,0),(0,1) and (1,0),(1,1)); no reshapes or strided gathers.
    taps = []
    for kh in range(K2):
        for kw in range(K2):
            a = (kh * W1 + kw) * B
            taps.append(jnp.concatenate(
                [h1[a:a + 2 * B], h1[a + W1 * B:a + W1 * B + 2 * B]], axis=0))
    pcol = jnp.concatenate(taps, axis=-1)          # (4*B, 90), rows (pos2, b)
    w2 = p_ref[R_W2:R_W2 + KK2, 0:C2]
    h2 = jnp.dot(pcol, w2, preferred_element_type=jnp.float32)
    h2 = h2 + p_ref[R_B2:R_B2 + 1, 0:C2]
    # BatchNorm2d(20) -- the spec has NO activation between BN2 and the pool.
    h2 = _bn_train(h2, p_ref[R_G2:R_G2 + 1, 0:C2],
                   p_ref[R_BE2:R_BE2 + 1, 0:C2])

    # ---- MaxPool2d(2) over the whole 2x2 map + squeeze() -> (B, 20).
    # With (pos, b) row order this is a max of four aligned 8-row blocks and
    # the result rows are already batch-major.
    pooled = jnp.maximum(jnp.maximum(h2[0:B], h2[B:2 * B]),
                         jnp.maximum(h2[2 * B:3 * B], h2[3 * B:4 * B]))

    # ---- Linear(20, 20) -> BatchNorm1d(20) -> LeakyReLU -> Linear(20, num_out)
    z = jnp.dot(pooled, p_ref[R_W3:R_W3 + C2, 0:FC],
                preferred_element_type=jnp.float32)
    z = z + p_ref[R_B3:R_B3 + 1, 0:FC]
    z = _bn_train(z, p_ref[R_G3:R_G3 + 1, 0:FC], p_ref[R_BE3:R_BE3 + 1, 0:FC])
    z = _leaky_relu(z)
    out = jnp.dot(z, p_ref[R_W4:R_W4 + FC, 0:NUM_OUT],
                  preferred_element_type=jnp.float32)
    out_ref[...] = out + p_ref[R_B4:R_B4 + 1, 0:NUM_OUT]


@jax.jit
def taxi_simple_cnn(x_nhwc, pslab):
    """x_nhwc: (B, 5, 5, 3) f32 (the tensor *before* PyTorch's permute)."""
    assert x_nhwc.shape == (B, W0, W0, C0)
    # conv1 im2col, position-major / batch-minor rows.  allow_input_fusion lets
    # XLA fuse this producer into the pallas_call operand instead of writing
    # xcol to HBM and reading it back.
    cols = [x_nhwc[:, kh:kh + W1, kw:kw + W1, :]
            for kh in range(K1) for kw in range(K1)]
    xcol = (jnp.concatenate(cols, axis=-1)          # (B, 4, 4, 12)
            .transpose(1, 2, 0, 3)                  # (4, 4, B, 12)
            .reshape(W1 * W1 * B, KK1))             # row = (oh*4+ow)*B + b

    vmem = pl.BlockSpec(memory_space=pltpu.MemorySpace.VMEM)
    return pl.pallas_call(
        taxi_cnn_kernel,
        out_shape=jax.ShapeDtypeStruct((B, NUM_OUT), jnp.float32),
        in_specs=[vmem, vmem],          # exactly 2 operand DMAs
        out_specs=vmem,
        compiler_params=pltpu.CompilerParams(
            allow_input_fusion=[True, False]),      # fuse the im2col producer
    )(xcol, pslab)


def init_params(key):
    """Random weights, already in kernel layout.

    PyTorch import note: nn.Conv2d stores (c_out, c_in, kh, kw) -> permute to
    (kh, kw, c_in, c_out) then reshape to (kh*kw*c_in, c_out); nn.Linear stores
    (out, in) -> transpose to (in, out).
    """
    ks = jax.random.split(key, 8)
    p = dict(
        w1=jax.random.normal(ks[0], (KK1, C1), jnp.float32) * 0.1,
        b1=jax.random.normal(ks[1], (C1,), jnp.float32) * 0.1,
        w2=jax.random.normal(ks[2], (KK2, C2), jnp.float32) * 0.1,
        b2=jax.random.normal(ks[3], (C2,), jnp.float32) * 0.1,
        w3=jax.random.normal(ks[4], (C2, FC), jnp.float32) * 0.1,
        b3=jax.random.normal(ks[5], (FC,), jnp.float32) * 0.1,
        w4=jax.random.normal(ks[6], (FC, NUM_OUT), jnp.float32) * 0.1,
        b4=jax.random.normal(ks[7], (NUM_OUT,), jnp.float32) * 0.1,
        # BatchNorm affine params: PyTorch init (gamma=1, beta=0).
        g1=jnp.ones((C1,), jnp.float32), be1=jnp.zeros((C1,), jnp.float32),
        g2=jnp.ones((C2,), jnp.float32), be2=jnp.zeros((C2,), jnp.float32),
        g3=jnp.ones((FC,), jnp.float32), be3=jnp.zeros((FC,), jnp.float32),
    )
    return p


def pack_params(p):
    """Pack every weight/vector into one f32 slab (one DMA).

    NOTE: left at (176, 20) / lane offset 0 per review ("low priority"); a
    lane-dense repack would reintroduce in-kernel lane relayouts for the matmul
    operands, which the position-major layout fix is meant to remove.
    """
    P = jnp.zeros((P_ROWS, P_COLS), jnp.float32)
    P = P.at[R_W1:R_W1 + KK1, 0:C1].set(p["w1"])
    P = P.at[R_W2:R_W2 + KK2, 0:C2].set(p["w2"])
    P = P.at[R_W3:R_W3 + C2, 0:FC].set(p["w3"])
    P = P.at[R_W4:R_W4 + FC, 0:NUM_OUT].set(p["w4"])
    P = P.at[R_B1, 0:C1].set(p["b1"])
    P = P.at[R_G1, 0:C1].set(p["g1"])
    P = P.at[R_BE1, 0:C1].set(p["be1"])
    P = P.at[R_B2, 0:C2].set(p["b2"])
    P = P.at[R_G2, 0:C2].set(p["g2"])
    P = P.at[R_BE2, 0:C2].set(p["be2"])
    P = P.at[R_B3, 0:FC].set(p["b3"])
    P = P.at[R_G3, 0:FC].set(p["g3"])
    P = P.at[R_BE3, 0:FC].set(p["be3"])
    P = P.at[R_B4, 0:NUM_OUT].set(p["b4"])
    return P


# ---- pure-JAX reference (training-mode forward), for layout verification ----
def reference_forward(x_nhwc, p):
    def conv(x, w_rows, k):  # w_rows: (k*k*cin, cout), row = (kh*k+kw)*cin + ci
        b_, h, w, cin = x.shape
        ho, wo = h - k + 1, w - k + 1
        cols = [x[:, kh:kh + ho, kw:kw + wo, :]
                for kh in range(k) for kw in range(k)]
        col = jnp.concatenate(cols, axis=-1).reshape(b_ * ho * wo, k * k * cin)
        y = col @ w_rows
        return y.reshape(b_, ho, wo, w_rows.shape[1])

    def bn(x, g, b):  # biased variance over all axes but channels
        axes = tuple(range(x.ndim - 1))
        mean = x.mean(axes, keepdims=True)
        var = ((x - mean) ** 2).mean(axes, keepdims=True)
        return (x - mean) * g * jax.lax.rsqrt(var + EPS) + b

    def lrelu(x):
        return jnp.where(x > 0, x, NEG_SLOPE * x)

    h = conv(x_nhwc, p["w1"], K1) + p["b1"]
    h = lrelu(bn(h, p["g1"], p["be1"]))
    h = conv(h, p["w2"], K2) + p["b2"]
    h = bn(h, p["g2"], p["be2"])               # no activation before the pool
    pooled = h.max(axis=(1, 2))                # MaxPool2d(2) over the 2x2 map
    z = pooled @ p["w3"] + p["b3"]
    z = lrelu(bn(z, p["g3"], p["be3"]))
    return z @ p["w4"] + p["b4"]


if __name__ == "__main__":
    key = jax.random.PRNGKey(0)
    kx, kp = jax.random.split(key)
    x = jax.random.normal(kx, (B, W0, W0, C0), jnp.float32)   # NHWC, pre-permute
    params = init_params(kp)
    pslab = pack_params(params)

    out = taxi_simple_cnn(x, pslab)
    jax.block_until_ready(out)

    assert out.shape == (B, NUM_OUT) and out.dtype == jnp.float32
    assert bool(jnp.all(jnp.isfinite(out)))

    # Verify the position-major reordering left the output batch-major and the
    # math unchanged (loose bound covers MXU f32 pass / reduction-order diffs;
    # a layout bug would be O(1) off).
    ref = reference_forward(x, params)
    err = float(jnp.max(jnp.abs(out - ref)))
    assert err < 1e-2, f"kernel deviates from pure-JAX reference: max|diff|={err}"

    # TODO(synk): BatchNorm running_mean/running_var momentum updates (training
    # buffer state) are not produced; only normalized forward activations.
    print("KERNEL_OK")
</pallas_src>

<mosaic_0001>
module attributes {stable_mosaic.version = 11 : i64} {
  func.func @taxi_cnn_kernel(%arg0: memref<128x12xf32, #tpu.memory_space<vmem>>, %arg1: memref<176x20xf32, #tpu.memory_space<vmem>>, %arg2: memref<8x6xf32, #tpu.memory_space<vmem>>) attributes {dimension_semantics = [], scalar_prefetch = 0 : i64, scratch_operands = 0 : i64, tpu.core_type = #tpu.core_type<tc>} {
    %c0 = arith.constant 0 : index
    %c0_0 = arith.constant 0 : index
    %0 = vector.load %arg1[%c0, %c0_0] : memref<176x20xf32, #tpu.memory_space<vmem>>, vector<12x10xf32>
    %c0_1 = arith.constant 0 : index
    %c0_2 = arith.constant 0 : index
    %1 = vector.load %arg0[%c0_1, %c0_2] : memref<128x12xf32, #tpu.memory_space<vmem>>, vector<128x12xf32>
    %cst = arith.constant dense<0.000000e+00> : vector<128x10xf32>
    %2 = tpu.matmul %1, %0, %cst {dimension_numbers = #tpu.dot_dimension_numbers<[1], [0], [0], [1], [0, 0, 1, 1], [], []>} : vector<128x12xf32>, vector<12x10xf32>, vector<128x10xf32> -> vector<128x10xf32>
    %c160 = arith.constant 160 : index
    %c0_3 = arith.constant 0 : index
    %3 = vector.load %arg1[%c160, %c0_3] : memref<176x20xf32, #tpu.memory_space<vmem>>, vector<1x10xf32>
    %4 = vector.broadcast %3 : vector<1x10xf32> to vector<128x10xf32>
    %5 = arith.addf %2, %4 : vector<128x10xf32>
    %c161 = arith.constant 161 : index
    %c0_4 = arith.constant 0 : index
    %6 = vector.load %arg1[%c161, %c0_4] : memref<176x20xf32, #tpu.memory_space<vmem>>, vector<1x10xf32>
    %c162 = arith.constant 162 : index
    %c0_5 = arith.constant 0 : index
    %7 = vector.load %arg1[%c162, %c0_5] : memref<176x20xf32, #tpu.memory_space<vmem>>, vector<1x10xf32>
    %cst_6 = arith.constant dense<0.000000e+00> : vector<10xf32>
    %8 = vector.multi_reduction <add>, %5, %cst_6 [0] : vector<128x10xf32> to vector<10xf32>
    %9 = vector.shape_cast %8 : vector<10xf32> to vector<1x10xf32>
    %cst_7 = arith.constant 7.812500e-03 : f32
    %10 = vector.broadcast %cst_7 : f32 to vector<1x10xf32>
    %11 = arith.mulf %9, %10 : vector<1x10xf32>
    %12 = arith.mulf %5, %5 : vector<128x10xf32>
    %cst_8 = arith.constant dense<0.000000e+00> : vector<10xf32>
    %13 = vector.multi_reduction <add>, %12, %cst_8 [0] : vector<128x10xf32> to vector<10xf32>
    %14 = vector.shape_cast %13 : vector<10xf32> to vector<1x10xf32>
    %cst_9 = arith.constant 7.812500e-03 : f32
    %15 = vector.broadcast %cst_9 : f32 to vector<1x10xf32>
    %16 = arith.mulf %14, %15 : vector<1x10xf32>
    %17 = arith.mulf %11, %11 : vector<1x10xf32>
    %18 = arith.subf %16, %17 : vector<1x10xf32>
    %cst_10 = arith.constant 0.000000e+00 : f32
    %19 = vector.broadcast %cst_10 : f32 to vector<1x10xf32>
    %20 = arith.maximumf %18, %19 : vector<1x10xf32>
    %cst_11 = arith.constant 9.99999974E-6 : f32
    %21 = vector.broadcast %cst_11 : f32 to vector<1x10xf32>
    %22 = arith.addf %20, %21 : vector<1x10xf32>
    %23 = math.rsqrt %22 : vector<1x10xf32>
    %24 = arith.mulf %6, %23 : vector<1x10xf32>
    %25 = vector.broadcast %24 : vector<1x10xf32> to vector<128x10xf32>
    %26 = arith.mulf %5, %25 : vector<128x10xf32>
    %27 = arith.mulf %11, %24 : vector<1x10xf32>
    %28 = arith.subf %7, %27 : vector<1x10xf32>
    %29 = vector.broadcast %28 : vector<1x10xf32> to vector<128x10xf32>
    %30 = arith.addf %26, %29 : vector<128x10xf32>
    %cst_12 = arith.constant 0.00999999977 : f32
    %31 = vector.broadcast %cst_12 : f32 to vector<128x10xf32>
    %32 = arith.mulf %31, %30 : vector<128x10xf32>
    %33 = arith.maximumf %30, %32 : vector<128x10xf32>
    %34 = vector.extract_strided_slice %33 {offsets = [0, 0], sizes = [16, 10], strides = [1, 1]} : vector<128x10xf32> to vector<16x10xf32>
    %35 = vector.extract_strided_slice %33 {offsets = [32, 0], sizes = [16, 10], strides = [1, 1]} : vector<128x10xf32> to vector<16x10xf32>
    %36 = tpu.concatenate %34, %35 in 0 : vector<16x10xf32>, vector<16x10xf32> -> vector<32x10xf32>
    %37 = vector.extract_strided_slice %33 {offsets = [8, 0], sizes = [16, 10], strides = [1, 1]} : vector<128x10xf32> to vector<16x10xf32>
    %38 = vector.extract_strided_slice %33 {offsets = [40, 0], sizes = [16, 10], strides = [1, 1]} : vector<128x10xf32> to vector<16x10xf32>
    %39 = tpu.concatenate %37, %38 in 0 : vector<16x10xf32>, vector<16x10xf32> -> vector<32x10xf32>
    %40 = vector.extract_strided_slice %33 {offsets = [16, 0], sizes = [16, 10], strides = [1, 1]} : vector<128x10xf32> to vector<16x10xf32>
    %41 = vector.extract_strided_slice %33 {offsets = [48, 0], sizes = [16, 10], strides = [1, 1]} : vector<128x10xf32> to vector<16x10xf32>
    %42 = tpu.concatenate %40, %41 in 0 : vector<16x10xf32>, vector<16x10xf32> -> vector<32x10xf32>
    %43 = vector.extract_strided_slice %33 {offsets = [32, 0], sizes = [16, 10], strides = [1, 1]} : vector<128x10xf32> to vector<16x10xf32>
    %44 = vector.extract_strided_slice %33 {offsets = [64, 0], sizes = [16, 10], strides = [1, 1]} : vector<128x10xf32> to vector<16x10xf32>
    %45 = tpu.concatenate %43, %44 in 0 : vector<16x10xf32>, vector<16x10xf32> -> vector<32x10xf32>
    %46 = vector.extract_strided_slice %33 {offsets = [40, 0], sizes = [16, 10], strides = [1, 1]} : vector<128x10xf32> to vector<16x10xf32>
    %47 = vector.extract_strided_slice %33 {offsets = [72, 0], sizes = [16, 10], strides = [1, 1]} : vector<128x10xf32> to vector<16x10xf32>
    %48 = tpu.concatenate %46, %47 in 0 : vector<16x10xf32>, vector<16x10xf32> -> vector<32x10xf32>
    %49 = vector.extract_strided_slice %33 {offsets = [48, 0], sizes = [16, 10], strides = [1, 1]} : vector<128x10xf32> to vector<16x10xf32>
    %50 = vector.extract_strided_slice %33 {offsets = [80, 0], sizes = [16, 10], strides = [1, 1]} : vector<128x10xf32> to vector<16x10xf32>
    %51 = tpu.concatenate %49, %50 in 0 : vector<16x10xf32>, vector<16x10xf32> -> vector<32x10xf32>
    %52 = vector.extract_strided_slice %33 {offsets = [64, 0], sizes = [16, 10], strides = [1, 1]} : vector<128x10xf32> to vector<16x10xf32>
    %53 = vector.extract_strided_slice %33 {offsets = [96, 0], sizes = [16, 10], strides = [1, 1]} : vector<128x10xf32> to vector<16x10xf32>
    %54 = tpu.concatenate %52, %53 in 0 : vector<16x10xf32>, vector<16x10xf32> -> vector<32x10xf32>
    %55 = vector.extract_strided_slice %33 {offsets = [72, 0], sizes = [16, 10], strides = [1, 1]} : vector<128x10xf32> to vector<16x10xf32>
    %56 = vector.extract_strided_slice %33 {offsets = [104, 0], sizes = [16, 10], strides = [1, 1]} : vector<128x10xf32> to vector<16x10xf32>
    %57 = tpu.concatenate %55, %56 in 0 : vector<16x10xf32>, vector<16x10xf32> -> vector<32x10xf32>
    %58 = vector.extract_strided_slice %33 {offsets = [80, 0], sizes = [16, 10], strides = [1, 1]} : vector<128x10xf32> to vector<16x10xf32>
    %59 = vector.extract_strided_slice %33 {offsets = [112, 0], sizes = [16, 10], strides = [1, 1]} : vector<128x10xf32> to vector<16x10xf32>
    %60 = tpu.concatenate %58, %59 in 0 : vector<16x10xf32>, vector<16x10xf32> -> vector<32x10xf32>
    %61 = tpu.concatenate %36, %39, %42, %45, %48, %51, %54, %57, %60 in 1 : vector<32x10xf32>, vector<32x10xf32>, vector<32x10xf32>, vector<32x10xf32>, vector<32x10xf32>, vector<32x10xf32>, vector<32x10xf32>, vector<32x10xf32>, vector<32x10xf32> -> vector<32x90xf32>
    %c16 = arith.constant 16 : index
    %c0_13 = arith.constant 0 : index
    %62 = vector.load %arg1[%c16, %c0_13] : memref<176x20xf32, #tpu.memory_space<vmem>>, vector<90x20xf32>
    %cst_14 = arith.constant dense<0.000000e+00> : vector<32x20xf32>
    %63 = tpu.matmul %61, %62, %cst_14 {dimension_numbers = #tpu.dot_dimension_numbers<[1], [0], [0], [1], [0, 0, 1, 1], [], []>} : vector<32x90xf32>, vector<90x20xf32>, vector<32x20xf32> -> vector<32x20xf32>
    %c163 = arith.constant 163 : index
    %c0_15 = arith.constant 0 : index
    %64 = vector.load %arg1[%c163, %c0_15] : memref<176x20xf32, #tpu.memory_space<vmem>>, vector<1x20xf32>
    %65 = vector.broadcast %64 : vector<1x20xf32> to vector<32x20xf32>
    %66 = arith.addf %63, %65 : vector<32x20xf32>
    %c164 = arith.constant 164 : index
    %c0_16 = arith.constant 0 : index
    %67 = vector.load %arg1[%c164, %c0_16] : memref<176x20xf32, #tpu.memory_space<vmem>>, vector<1x20xf32>
    %c165 = arith.constant 165 : index
    %c0_17 = arith.constant 0 : index
    %68 = vector.load %arg1[%c165, %c0_17] : memref<176x20xf32, #tpu.memory_space<vmem>>, vector<1x20xf32>
    %cst_18 = arith.constant dense<0.000000e+00> : vector<20xf32>
    %69 = vector.multi_reduction <add>, %66, %cst_18 [0] : vector<32x20xf32> to vector<20xf32>
    %70 = vector.shape_cast %69 : vector<20xf32> to vector<1x20xf32>
    %cst_19 = arith.constant 3.125000e-02 : f32
    %71 = vector.broadcast %cst_19 : f32 to vector<1x20xf32>
    %72 = arith.mulf %70, %71 : vector<1x20xf32>
    %73 = arith.mulf %66, %66 : vector<32x20xf32>
    %cst_20 = arith.constant dense<0.000000e+00> : vector<20xf32>
    %74 = vector.multi_reduction <add>, %73, %cst_20 [0] : vector<32x20xf32> to vector<20xf32>
    %75 = vector.shape_cast %74 : vector<20xf32> to vector<1x20xf32>
    %cst_21 = arith.constant 3.125000e-02 : f32
    %76 = vector.broadcast %cst_21 : f32 to vector<1x20xf32>
    %77 = arith.mulf %75, %76 : vector<1x20xf32>
    %78 = arith.mulf %72, %72 : vector<1x20xf32>
    %79 = arith.subf %77, %78 : vector<1x20xf32>
    %cst_22 = arith.constant 0.000000e+00 : f32
    %80 = vector.broadcast %cst_22 : f32 to vector<1x20xf32>
    %81 = arith.maximumf %79, %80 : vector<1x20xf32>
    %cst_23 = arith.constant 9.99999974E-6 : f32
    %82 = vector.broadcast %cst_23 : f32 to vector<1x20xf32>
    %83 = arith.addf %81, %82 : vector<1x20xf32>
    %84 = math.rsqrt %83 : vector<1x20xf32>
    %85 = arith.mulf %67, %84 : vector<1x20xf32>
    %86 = vector.broadcast %85 : vector<1x20xf32> to vector<32x20xf32>
    %87 = arith.mulf %66, %86 : vector<32x20xf32>
    %88 = arith.mulf %72, %85 : vector<1x20xf32>
    %89 = arith.subf %68, %88 : vector<1x20xf32>
    %90 = vector.broadcast %89 : vector<1x20xf32> to vector<32x20xf32>
    %91 = arith.addf %87, %90 : vector<32x20xf32>
    %92 = vector.extract_strided_slice %91 {offsets = [0, 0], sizes = [8, 20], strides = [1, 1]} : vector<32x20xf32> to vector<8x20xf32>
    %93 = vector.extract_strided_slice %91 {offsets = [8, 0], sizes = [8, 20], strides = [1, 1]} : vector<32x20xf32> to vector<8x20xf32>
    %94 = arith.maximumf %92, %93 : vector<8x20xf32>
    %95 = vector.extract_strided_slice %91 {offsets = [16, 0], sizes = [8, 20], strides = [1, 1]} : vector<32x20xf32> to vector<8x20xf32>
    %96 = vector.extract_strided_slice %91 {offsets = [24, 0], sizes = [8, 20], strides = [1, 1]} : vector<32x20xf32> to vector<8x20xf32>
    %97 = arith.maximumf %95, %96 : vector<8x20xf32>
    %98 = arith.maximumf %94, %97 : vector<8x20xf32>
    %c112 = arith.constant 112 : index
    %c0_24 = arith.constant 0 : index
    %99 = vector.load %arg1[%c112, %c0_24] : memref<176x20xf32, #tpu.memory_space<vmem>>, vector<20x20xf32>
    %cst_25 = arith.constant dense<0.000000e+00> : vector<8x20xf32>
    %100 = tpu.matmul %98, %99, %cst_25 {dimension_numbers = #tpu.dot_dimension_numbers<[1], [0], [0], [1], [0, 0, 1, 1], [], []>} : vector<8x20xf32>, vector<20x20xf32>, vector<8x20xf32> -> vector<8x20xf32>
    %c166 = arith.constant 166 : index
    %c0_26 = arith.constant 0 : index
    %101 = vector.load %arg1[%c166, %c0_26] : memref<176x20xf32, #tpu.memory_space<vmem>>, vector<1x20xf32>
    %102 = vector.broadcast %101 : vector<1x20xf32> to vector<8x20xf32>
    %103 = arith.addf %100, %102 : vector<8x20xf32>
    %c167 = arith.constant 167 : index
    %c0_27 = arith.constant 0 : index
    %104 = vector.load %arg1[%c167, %c0_27] : memref<176x20xf32, #tpu.memory_space<vmem>>, vector<1x20xf32>
    %c168 = arith.constant 168 : index
    %c0_28 = arith.constant 0 : index
    %105 = vector.load %arg1[%c168, %c0_28] : memref<176x20xf32, #tpu.memory_space<vmem>>, vector<1x20xf32>
    %cst_29 = arith.constant dense<0.000000e+00> : vector<20xf32>
    %106 = vector.multi_reduction <add>, %103, %cst_29 [0] : vector<8x20xf32> to vector<20xf32>
    %107 = vector.shape_cast %106 : vector<20xf32> to vector<1x20xf32>
    %cst_30 = arith.constant 1.250000e-01 : f32
    %108 = vector.broadcast %cst_30 : f32 to vector<1x20xf32>
    %109 = arith.mulf %107, %108 : vector<1x20xf32>
    %110 = arith.mulf %103, %103 : vector<8x20xf32>
    %cst_31 = arith.constant dense<0.000000e+00> : vector<20xf32>
    %111 = vector.multi_reduction <add>, %110, %cst_31 [0] : vector<8x20xf32> to vector<20xf32>
    %112 = vector.shape_cast %111 : vector<20xf32> to vector<1x20xf32>
    %cst_32 = arith.constant 1.250000e-01 : f32
    %113 = vector.broadcast %cst_32 : f32 to vector<1x20xf32>
    %114 = arith.mulf %112, %113 : vector<1x20xf32>
    %115 = arith.mulf %109, %109 : vector<1x20xf32>
    %116 = arith.subf %114, %115 : vector<1x20xf32>
    %cst_33 = arith.constant 0.000000e+00 : f32
    %117 = vector.broadcast %cst_33 : f32 to vector<1x20xf32>
    %118 = arith.maximumf %116, %117 : vector<1x20xf32>
    %cst_34 = arith.constant 9.99999974E-6 : f32
    %119 = vector.broadcast %cst_34 : f32 to vector<1x20xf32>
    %120 = arith.addf %118, %119 : vector<1x20xf32>
    %121 = math.rsqrt %120 : vector<1x20xf32>
    %122 = arith.mulf %104, %121 : vector<1x20xf32>
    %123 = vector.broadcast %122 : vector<1x20xf32> to vector<8x20xf32>
    %124 = arith.mulf %103, %123 : vector<8x20xf32>
    %125 = arith.mulf %109, %122 : vector<1x20xf32>
    %126 = arith.subf %105, %125 : vector<1x20xf32>
    %127 = vector.broadcast %126 : vector<1x20xf32> to vector<8x20xf32>
    %128 = arith.addf %124, %127 : vector<8x20xf32>
    %cst_35 = arith.constant 0.00999999977 : f32
    %129 = vector.broadcast %cst_35 : f32 to vector<8x20xf32>
    %130 = arith.mulf %129, %128 : vector<8x20xf32>
    %131 = arith.maximumf %128, %130 : vector<8x20xf32>
    %c136 = arith.constant 136 : index
    %c0_36 = arith.constant 0 : index
    %132 = vector.load %arg1[%c136, %c0_36] : memref<176x20xf32, #tpu.memory_space<vmem>>, vector<20x6xf32>
    %cst_37 = arith.constant dense<0.000000e+00> : vector<8x6xf32>
    %133 = tpu.matmul %131, %132, %cst_37 {dimension_numbers = #tpu.dot_dimension_numbers<[1], [0], [0], [1], [0, 0, 1, 1], [], []>} : vector<8x20xf32>, vector<20x6xf32>, vector<8x6xf32> -> vector<8x6xf32>
    %c169 = arith.constant 169 : index
    %c0_38 = arith.constant 0 : index
    %134 = vector.load %arg1[%c169, %c0_38] : memref<176x20xf32, #tpu.memory_space<vmem>>, vector<1x6xf32>
    %135 = vector.broadcast %134 : vector<1x6xf32> to vector<8x6xf32>
    %136 = arith.addf %133, %135 : vector<8x6xf32>
    %c0_39 = arith.constant 0 : index
    %c0_40 = arith.constant 0 : index
    %137 = vector.load %arg2[%c0_39, %c0_40] : memref<8x6xf32, #tpu.memory_space<vmem>>, vector<8x6xf32>
    tpu.vector_store %arg2[%c0_39, %c0_40], %136 {strides = array<i32>} : memref<8x6xf32, #tpu.memory_space<vmem>>, vector<8x6xf32>,
    return
  }
}

</mosaic_0001>

<llo_original>
// kernel: taxi_simple_cnn.1
$region0: #{taxi_simple_cnn.1}
  #allocation0 [shape = 'u32[]', space=smem, size = 0x4, offset = 0x4, fixed_abs, tag = 'smem constant byte address 0x4 - core index']
  #allocation1 [shape = 'u32[144,128]{1,0:T(1,128)}', space=vmem, size = 0x12000, scoped, tag = 'internal scratch']
  %s0 = inlined_call_operand.vmem [shape: f32[128,12], index: 0, kind: input, shape index: {}]
  %s1 = inlined_call_operand.vmem [shape: f32[176,20], index: 1, kind: input, shape index: {}]
  %s2 = inlined_call_operand.hbm [shape: f32[8,6], index: 2, kind: output, shape index: {}]
  %s3 = sld [smem:[#allocation0]]
  $region18: #{taxi_simple_cnn.1} parent=0
    _
  %s5 = ssub.s32 1, %s3
  %s6 = scalar_select 0, %s5, %s3
  $region1: #{taxi_simple_cnn.1} parent=0
    #allocation2 [shape = 'u8[4096]{0}', space=vmem, size = 0x1000, scoped, tag = 'output window, operand 0, single buffered']
    #allocation3 [shape = 's32[1]{0}', space=sflag, size = 0x4, scoped, tag = 'scoped memory for taxi_simple_cnn.1']
    %7 = vsyncpa [#allocation3], 0
    // Predicated region
    $region2: #{taxi_simple_cnn.1} parent=1 // pred_check
      _
    $region3: #{taxi_simple_cnn.1} parent=1 // pred_check_branch
      %9 = sbr.rel (0) target = $region5
    $region4: #{taxi_simple_cnn.1} parent=1 // pred_region
      _
    $region5: #{taxi_simple_cnn.1} parent=1 // pred_fallthru
      _
    // Predicated region
    $region6: #{taxi_simple_cnn.1} parent=1 // pred_check
      _
    $region7: #{taxi_simple_cnn.1} parent=1 // pred_check_branch
      %11 = sbr.rel (0) target = $region9
    $region8: #{taxi_simple_cnn.1} parent=1 // pred_region
      _
    $region9: #{taxi_simple_cnn.1} parent=1 // pred_fallthru
      _
    %v12 = vld [vmem:[%s1] sm:$0xff]
    %v13 = vld [vmem:[%s1 + $0x8] sm:$0xf]
    %v14 = vld [vmem:[%s0] sm:$0xff]
    %v15 = vld [vmem:[%s0 + $0x8] sm:$0xff]
    %v16 = vld [vmem:[%s0 + $0x10] sm:$0xff]
    %v17 = vld [vmem:[%s0 + $0x18] sm:$0xff]
    %v18 = vld [vmem:[%s0 + $0x20] sm:$0xff]
    %v19 = vld [vmem:[%s0 + $0x28] sm:$0xff]
    %v20 = vld [vmem:[%s0 + $0x30] sm:$0xff]
    %v21 = vld [vmem:[%s0 + $0x38] sm:$0xff]
    %v22 = vld [vmem:[%s0 + $0x40] sm:$0xff]
    %v23 = vld [vmem:[%s0 + $0x48] sm:$0xff]
    %v24 = vld [vmem:[%s0 + $0x50] sm:$0xff]
    %v25 = vld [vmem:[%s0 + $0x58] sm:$0xff]
    %v26 = vld [vmem:[%s0 + $0x60] sm:$0xff]
    %v27 = vld [vmem:[%s0 + $0x68] sm:$0xff]
    %v28 = vld [vmem:[%s0 + $0x70] sm:$0xff]
    %v29 = vld [vmem:[%s0 + $0x78] sm:$0xff]
    %v30 = vld [vmem:[%s1 + $0xa0] sm:$0x1]
    %v31 = vlaneseq
    %v32 = vshrl.u32 %v31, 7
    %v33 = vsub.s32 0, %v32
    %v34 = vrot.slane %v30, %v33
    %vm35 = vcmask 97280
    %v37 = vsel %vm35, %v14, 0
    %v40 = vsel %vm35, %v15, 0
    %v43 = vsel %vm35, %v16, 0
    %v46 = vsel %vm35, %v17, 0
    %v49 = vsel %vm35, %v18, 0
    %v52 = vsel %vm35, %v19, 0
    %v55 = vsel %vm35, %v20, 0
    %v58 = vsel %vm35, %v21, 0
    %v61 = vsel %vm35, %v22, 0
    %v64 = vsel %vm35, %v23, 0
    %v67 = vsel %vm35, %v24, 0
    %v70 = vsel %vm35, %v25, 0
    %v73 = vsel %vm35, %v26, 0
    %v76 = vsel %vm35, %v27, 0
    %v79 = vsel %vm35, %v28, 0
    %v82 = vsel %vm35, %v29, 0
    %vm84 = vcmask 1043456
    %v86 = vsel %vm84, %v13, 0
    %88 = vmatprep.subr.mxu0 0.0
    %89 = vmatpush1.msra.mxu0 %v12
    %90 = vmatprep.subr.mxu0 0.0
    %91 = vmatpush1.msra.mxu0 %v86
    %92 = vmatprep.subr.mxu0 0.0
    %93 = vmatpush1.msra.mxu0 0.0
    %94 = vmatprep.subr.mxu0 0.0
    %95 = vmatpush1.msra.mxu0 0.0
    %96 = vmatprep.subr.mxu0 0.0
    %97 = vmatpush1.msra.mxu0 0.0
    %98 = vmatprep.subr.mxu0 0.0
    %99 = vmatpush1.msra.mxu0 0.0
    %100 = vmatprep.subr.mxu0 0.0
    %101 = vmatpush1.msra.mxu0 0.0
    %102 = vmatprep.subr.mxu0 0.0
    %103 = vmatpush1.msra.mxu0 0.0
    %104 = vmatprep.subr.mxu0 0.0
    %105 = vmatpush1.msra.mxu0 0.0
    %106 = vmatprep.subr.mxu0 0.0
    %107 = vmatpush1.msra.mxu0 0.0
    %108 = vmatprep.subr.mxu0 0.0
    %109 = vmatpush1.msra.mxu0 0.0
    %110 = vmatprep.subr.mxu0 0.0
    %111 = vmatpush1.msra.mxu0 0.0
    %112 = vmatprep.subr.mxu0 0.0
    %113 = vmatpush1.msra.mxu0 0.0
    %114 = vmatprep.subr.mxu0 0.0
    %115 = vmatpush1.msra.mxu0 0.0
    %116 = vmatprep.subr.mxu0 0.0
    %117 = vmatpush1.msra.mxu0 0.0
    %118 = vmatprep.subr.mxu0 0.0
    %119 = vmatpush1.msra.mxu0 0.0
    %120 = vmatprep.subr.mxu0 0.0
    %121 = vmatpush1.msra.mxu0 0.0
    %122 = vmatprep.subr.mxu0 0.0
    %123 = vmatpush1.msra.mxu0 0.0
    %124 = vmatprep.subr.mxu0 0.0
    %125 = vmatpush1.msra.mxu0 0.0
    %126 = vmatprep.subr.mxu0 0.0
    %127 = vmatpush1.msra.mxu0 0.0
    %128 = vmatprep.subr.mxu0 0.0
    %129 = vmatpush1.msra.mxu0 0.0
    %130 = vmatprep.subr.mxu0 0.0
    %131 = vmatpush1.msra.mxu0 0.0
    %132 = vmatprep.subr.mxu0 0.0
    %133 = vmatpush1.msra.mxu0 0.0
    %134 = vmatprep.subr.mxu0 0.0
    %135 = vmatpush1.msra.mxu0 0.0
    %136 = vmatprep.subr.mxu0 0.0
    %137 = vmatpush1.msra.mxu0 0.0
    %138 = vmatprep.subr.mxu0 0.0
    %139 = vmatpush1.msra.mxu0 0.0
    %140 = vmatprep.subr.mxu0 0.0
    %141 = vmatpush1.msra.mxu0 0.0
    %142 = vmatprep.subr.mxu0 0.0
    %143 = vmatpush1.msra.mxu0 0.0
    %144 = vmatprep.subr.mxu0 0.0
    %145 = vmatpush1.msra.mxu0 0.0
    %146 = vmatprep.subr.mxu0 0.0
    %147 = vmatpush1.msra.mxu0 0.0
    %148 = vmatprep.subr.mxu0 0.0
    %149 = vmatpush1.msra.mxu0 0.0
    %150 = vmatprep.subr.mxu0 0.0
    %151 = vmatpush1.msra.mxu0 0.0
    %152 = vmatprep.mubr.f32.mxu0 0.0
    %153 = vmatmul.mubr.f32.gmra.mrb[0].mxu0 %v37
    %v154 = vpop.f32.mrb[0].mxu0
    %v155 = vadd.f32 %v34, %v154
    %v156 = vpop.f32.mrb[0].mxu0
    %157 = vmatprep.mubr.f32.mxu0 0.0
    %158 = vmatmul.mubr.f32.gmra.mrb[0].mxu0 %v40
    %v159 = vpop.f32.mrb[0].mxu0
    %v160 = vadd.f32 %v34, %v159
    %v161 = vpop.f32.mrb[0].mxu0
    %162 = vmatprep.mubr.f32.mxu0 0.0
    %163 = vmatmul.mubr.f32.gmra.mrb[0].mxu0 %v43
    %v164 = vpop.f32.mrb[0].mxu0
    %v165 = vadd.f32 %v34, %v164
    %v166 = vpop.f32.mrb[0].mxu0
    %167 = vmatprep.mubr.f32.mxu0 0.0
    %168 = vmatmul.mubr.f32.gmra.mrb[0].mxu0 %v46
    %v169 = vpop.f32.mrb[0].mxu0
    %v170 = vadd.f32 %v34, %v169
    %v171 = vpop.f32.mrb[0].mxu0
    %172 = vmatprep.mubr.f32.mxu0 0.0
    %173 = vmatmul.mubr.f32.gmra.mrb[0].mxu0 %v49
    %v174 = vpop.f32.mrb[0].mxu0
    %v175 = vadd.f32 %v34, %v174
    %v176 = vpop.f32.mrb[0].mxu0
    %177 = vmatprep.mubr.f32.mxu0 0.0
    %178 = vmatmul.mubr.f32.gmra.mrb[0].mxu0 %v52
    %v179 = vpop.f32.mrb[0].mxu0
    %v180 = vadd.f32 %v34, %v179
    %v181 = vpop.f32.mrb[0].mxu0
    %182 = vmatprep.mubr.f32.mxu0 0.0
    %183 = vmatmul.mubr.f32.gmra.mrb[0].mxu0 %v55
    %v184 = vpop.f32.mrb[0].mxu0
    %v185 = vadd.f32 %v34, %v184
    %v186 = vpop.f32.mrb[0].mxu0
    %187 = vmatprep.mubr.f32.mxu0 0.0
    %188 = vmatmul.mubr.f32.gmra.mrb[0].mxu0 %v58
    %v189 = vpop.f32.mrb[0].mxu0
    %v190 = vadd.f32 %v34, %v189
    %v191 = vpop.f32.mrb[0].mxu0
    %192 = vmatprep.mubr.f32.mxu0 0.0
    %193 = vmatmul.mubr.f32.gmra.mrb[0].mxu0 %v61
    %v194 = vpop.f32.mrb[0].mxu0
    %v195 = vadd.f32 %v34, %v194
    %v196 = vpop.f32.mrb[0].mxu0
    %197 = vmatprep.mubr.f32.mxu0 0.0
    %198 = vmatmul.mubr.f32.gmra.mrb[0].mxu0 %v64
    %v199 = vpop.f32.mrb[0].mxu0
    %v200 = vadd.f32 %v34, %v199
    %v201 = vpop.f32.mrb[0].mxu0
    %202 = vmatprep.mubr.f32.mxu0 0.0
    %203 = vmatmul.mubr.f32.gmra.mrb[0].mxu0 %v67
    %v204 = vpop.f32.mrb[0].mxu0
    %v205 = vadd.f32 %v34, %v204
    %v206 = vpop.f32.mrb[0].mxu0
    %207 = vmatprep.mubr.f32.mxu0 0.0
    %208 = vmatmul.mubr.f32.gmra.mrb[0].mxu0 %v70
    %v209 = vpop.f32.mrb[0].mxu0
    %v210 = vadd.f32 %v34, %v209
    %v211 = vpop.f32.mrb[0].mxu0
    %212 = vmatprep.mubr.f32.mxu0 0.0
    %213 = vmatmul.mubr.f32.gmra.mrb[0].mxu0 %v73
    %v214 = vpop.f32.mrb[0].mxu0
    %v215 = vadd.f32 %v34, %v214
    %v216 = vpop.f32.mrb[0].mxu0
    %217 = vmatprep.mubr.f32.mxu0 0.0
    %218 = vmatmul.mubr.f32.gmra.mrb[0].mxu0 %v76
    %v219 = vpop.f32.mrb[0].mxu0
    %v220 = vadd.f32 %v34, %v219
    %v221 = vpop.f32.mrb[0].mxu0
    %222 = vmatprep.mubr.f32.mxu0 0.0
    %223 = vmatmul.mubr.f32.gmra.mrb[0].mxu0 %v79
    %v224 = vpop.f32.mrb[0].mxu0
    %v225 = vadd.f32 %v34, %v224
    %v226 = vpop.f32.mrb[0].mxu0
    %227 = vmatprep.mubr.f32.mxu0 0.0
    %228 = vmatmul.mubr.f32.gmra.mrb[0].mxu0 %v82
    %v229 = vpop.f32.mrb[0].mxu0
    %v230 = vadd.f32 %v34, %v229
    %v231 = vpop.f32.mrb[0].mxu0
    %232 = vdwg.mxu0
    %v233 = vld [vmem:[%s1 + $0xa1] sm:$0x1]
    %v234 = vld [vmem:[%s1 + $0xa2] sm:$0x1]
    %vm235 = vcmask 80896
    %v236 = vsel %vm235, %v155, 0.0
    %v237 = vsel %vm235, %v160, 0.0
    %v238 = vadd.f32 %v236, %v237
    %v239 = vsel %vm235, %v165, 0.0
    %v240 = vadd.f32 %v238, %v239
    %v241 = vsel %vm235, %v170, 0.0
    %v242 = vadd.f32 %v240, %v241
    %v243 = vsel %vm235, %v175, 0.0
    %v244 = vadd.f32 %v242, %v243
    %v245 = vsel %vm235, %v180, 0.0
    %v246 = vadd.f32 %v244, %v245
    %v247 = vsel %vm235, %v185, 0.0
    %v248 = vadd.f32 %v246, %v247
    %v249 = vsel %vm235, %v190, 0.0
    %v250 = vadd.f32 %v248, %v249
    %v251 = vsel %vm235, %v195, 0.0
    %v252 = vadd.f32 %v250, %v251
    %v253 = vsel %vm235, %v200, 0.0
    %v254 = vadd.f32 %v252, %v253
    %v255 = vsel %vm235, %v205, 0.0
    %v256 = vadd.f32 %v254, %v255
    %v257 = vsel %vm235, %v210, 0.0
    %v258 = vadd.f32 %v256, %v257
    %v259 = vsel %vm235, %v215, 0.0
    %v260 = vadd.f32 %v258, %v259
    %v261 = vsel %vm235, %v220, 0.0
    %v262 = vadd.f32 %v260, %v261
    %v263 = vsel %vm235, %v225, 0.0
    %v264 = vadd.f32 %v262, %v263
    %v265 = vsel %vm235, %v230, 0.0
    %v266 = vadd.f32 %v264, %v265
    %v267 = vrot.slane %v266, 4
    %v268 = vadd.f32 %v266, %v267
    %v269 = vrot.slane %v268, 2
    %v270 = vadd.f32 %v268, %v269
    %v271 = vrot.slane %v270, 1
    %v272 = vadd.f32 %v270, %v271
    %v273 = vmul.f32 %v272, 0.0078125
    %v274 = vmul.f32 %v155, %v155
    %v275 = vmul.f32 %v160, %v160
    %v276 = vmul.f32 %v165, %v165
    %v277 = vmul.f32 %v170, %v170
    %v278 = vmul.f32 %v175, %v175
    %v279 = vmul.f32 %v180, %v180
    %v280 = vmul.f32 %v185, %v185
    %v281 = vmul.f32 %v190, %v190
    %v282 = vmul.f32 %v195, %v195
    %v283 = vmul.f32 %v200, %v200
    %v284 = vmul.f32 %v205, %v205
    %v285 = vmul.f32 %v210, %v210
    %v286 = vmul.f32 %v215, %v215
    %v287 = vmul.f32 %v220, %v220
    %v288 = vmul.f32 %v225, %v225
    %v289 = vmul.f32 %v230, %v230
    %v290 = vsel %vm235, %v274, 0.0
    %v291 = vsel %vm235, %v275, 0.0
    %v292 = vadd.f32 %v290, %v291
    %v293 = vsel %vm235, %v276, 0.0
    %v294 = vadd.f32 %v292, %v293
    %v295 = vsel %vm235, %v277, 0.0
    %v296 = vadd.f32 %v294, %v295
    %v297 = vsel %vm235, %v278, 0.0
    %v298 = vadd.f32 %v296, %v297
    %v299 = vsel %vm235, %v279, 0.0
    %v300 = vadd.f32 %v298, %v299
    %v301 = vsel %vm235, %v280, 0.0
    %v302 = vadd.f32 %v300, %v301
    %v303 = vsel %vm235, %v281, 0.0
    %v304 = vadd.f32 %v302, %v303
    %v305 = vsel %vm235, %v282, 0.0
    %v306 = vadd.f32 %v304, %v305
    %v307 = vsel %vm235, %v283, 0.0
    %v308 = vadd.f32 %v306, %v307
    %v309 = vsel %vm235, %v284, 0.0
    %v310 = vadd.f32 %v308, %v309
    %v311 = vsel %vm235, %v285, 0.0
    %v312 = vadd.f32 %v310, %v311
    %v313 = vsel %vm235, %v286, 0.0
    %v314 = vadd.f32 %v312, %v313
    %v315 = vsel %vm235, %v287, 0.0
    %v316 = vadd.f32 %v314, %v315
    %v317 = vsel %vm235, %v288, 0.0
    %v318 = vadd.f32 %v316, %v317
    %v319 = vsel %vm235, %v289, 0.0
    %v320 = vadd.f32 %v318, %v319
    %v321 = vrot.slane %v320, 4
    %v322 = vadd.f32 %v320, %v321
    %v323 = vrot.slane %v322, 2
    %v324 = vadd.f32 %v322, %v323
    %v325 = vrot.slane %v324, 1
    %v326 = vadd.f32 %v324, %v325
    %v327 = vmul.f32 %v326, 0.0078125
    %v328 = vmul.f32 %v273, %v273
    %v329 = vsub.f32 %v327, %v328
    %v330 = vmax.f32 %v329, 0.0
    %v331 = vadd.f32 %v330, 1e-05
    %v332 = vrsqrt.pop %v331
    %v333 = vmul.f32 %v233, %v332
    %v334 = vlaneseq
    %v335 = vshrl.u32 %v334, 7
    %v336 = vsub.s32 0, %v335
    %v337 = vrot.slane %v333, %v336
    %v338 = vmul.f32 %v155, %v337
    %v339 = vmul.f32 %v160, %v337
    %v340 = vmul.f32 %v165, %v337
    %v341 = vmul.f32 %v170, %v337
    %v342 = vmul.f32 %v175, %v337
    %v343 = vmul.f32 %v180, %v337
    %v344 = vmul.f32 %v185, %v337
    %v345 = vmul.f32 %v190, %v337
    %v346 = vmul.f32 %v195, %v337
    %v347 = vmul.f32 %v200, %v337
    %v348 = vmul.f32 %v205, %v337
    %v349 = vmul.f32 %v210, %v337
    %v350 = vmul.f32 %v215, %v337
    %v351 = vmul.f32 %v220, %v337
    %v352 = vmul.f32 %v225, %v337
    %v353 = vmul.f32 %v230, %v337
    %v354 = vmul.f32 %v273, %v333
    %v355 = vsub.f32 %v234, %v354
    %v356 = vlaneseq
    %v357 = vshrl.u32 %v356, 7
    %v358 = vsub.s32 0, %v357
    %v359 = vrot.slane %v355, %v358
    %v360 = vadd.f32 %v338, %v359
    %v361 = vadd.f32 %v339, %v359
    %v362 = vadd.f32 %v340, %v359
    %v363 = vadd.f32 %v341, %v359
    %v364 = vadd.f32 %v342, %v359
    %v365 = vadd.f32 %v343, %v359
    %v366 = vadd.f32 %v344, %v359
    %v367 = vadd.f32 %v345, %v359
    %v368 = vadd.f32 %v346, %v359
    %v369 = vadd.f32 %v347, %v359
    %v370 = vadd.f32 %v348, %v359
    %v371 = vadd.f32 %v349, %v359
    %v372 = vadd.f32 %v350, %v359
    %v373 = vadd.f32 %v351, %v359
    %v374 = vadd.f32 %v352, %v359
    %v375 = vadd.f32 %v353, %v359
    %v376 = vmul.f32 %v360, 0.01
    %v377 = vmul.f32 %v361, 0.01
    %v378 = vmul.f32 %v362, 0.01
    %v379 = vmul.f32 %v363, 0.01
    %v380 = vmul.f32 %v364, 0.01
    %v381 = vmul.f32 %v365, 0.01
    %v382 = vmul.f32 %v366, 0.01
    %v383 = vmul.f32 %v367, 0.01
    %v384 = vmul.f32 %v368, 0.01
    %v385 = vmul.f32 %v369, 0.01
    %v386 = vmul.f32 %v370, 0.01
    %v387 = vmul.f32 %v371, 0.01
    %v388 = vmul.f32 %v372, 0.01
    %v389 = vmul.f32 %v373, 0.01
    %v390 = vmul.f32 %v374, 0.01
    %v391 = vmul.f32 %v375, 0.01
    %v392 = vmax.f32 %v360, %v376
    %v393 = vmax.f32 %v361, %v377
    %v394 = vmax.f32 %v362, %v378
    %v395 = vmax.f32 %v363, %v379
    %v396 = vmax.f32 %v364, %v380
    %v397 = vmax.f32 %v365, %v381
    %v398 = vmax.f32 %v366, %v382
    %v399 = vmax.f32 %v367, %v383
    %v400 = vmax.f32 %v368, %v384
    %v401 = vmax.f32 %v369, %v385
    %v402 = vmax.f32 %v370, %v386
    %v403 = vmax.f32 %v371, %v387
    %v404 = vmax.f32 %v372, %v388
    %v405 = vmax.f32 %v373, %v389
    %v406 = vmax.f32 %v374, %v390
    %v407 = vmax.f32 %v375, %v391
    %412 = vrot.lane.b32.xlu0 %v393, 10
    %v413 = vpop.permute.xlu0 %412
    %414 = vrot.lane.b32.xlu0 %v394, 10
    %v415 = vpop.permute.xlu0 %414
    %416 = vrot.lane.b32.xlu0 %v397, 10
    %v417 = vpop.permute.xlu0 %416
    %418 = vrot.lane.b32.xlu0 %v398, 10
    %v419 = vpop.permute.xlu0 %418
    %426 = vrot.lane.b32.xlu0 %v394, 20
    %v427 = vpop.permute.xlu0 %426
    %428 = vrot.lane.b32.xlu0 %v395, 20
    %v429 = vpop.permute.xlu0 %428
    %430 = vrot.lane.b32.xlu0 %v398, 20
    %v431 = vpop.permute.xlu0 %430
    %432 = vrot.lane.b32.xlu0 %v399, 20
    %v433 = vpop.permute.xlu0 %432
    %441 = vrot.lane.b32.xlu0 %v396, 30
    %v442 = vpop.permute.xlu0 %441
    %443 = vrot.lane.b32.xlu0 %v397, 30
    %v444 = vpop.permute.xlu0 %443
    %445 = vrot.lane.b32.xlu0 %v400, 30
    %v446 = vpop.permute.xlu0 %445
    %447 = vrot.lane.b32.xlu0 %v401, 30
    %v448 = vpop.permute.xlu0 %447
    %454 = vrot.lane.b32.xlu0 %v397, 40
    %v455 = vpop.permute.xlu0 %454
    %456 = vrot.lane.b32.xlu0 %v398, 40
    %v457 = vpop.permute.xlu0 %456
    %458 = vrot.lane.b32.xlu0 %v401, 40
    %v459 = vpop.permute.xlu0 %458
    %460 = vrot.lane.b32.xlu0 %v402, 40
    %v461 = vpop.permute.xlu0 %460
    %467 = vrot.lane.b32.xlu0 %v398, 50
    %v468 = vpop.permute.xlu0 %467
    %469 = vrot.lane.b32.xlu0 %v399, 50
    %v470 = vpop.permute.xlu0 %469
    %471 = vrot.lane.b32.xlu0 %v402, 50
    %v472 = vpop.permute.xlu0 %471
    %473 = vrot.lane.b32.xlu0 %v403, 50
    %v474 = vpop.permute.xlu0 %473
    %481 = vrot.lane.b32.xlu0 %v400, 60
    %v482 = vpop.permute.xlu0 %481
    %483 = vrot.lane.b32.xlu0 %v401, 60
    %v484 = vpop.permute.xlu0 %483
    %485 = vrot.lane.b32.xlu0 %v404, 60
    %v486 = vpop.permute.xlu0 %485
    %487 = vrot.lane.b32.xlu0 %v405, 60
    %v488 = vpop.permute.xlu0 %487
    %494 = vrot.lane.b32.xlu0 %v401, 70
    %v495 = vpop.permute.xlu0 %494
    %496 = vrot.lane.b32.xlu0 %v402, 70
    %v497 = vpop.permute.xlu0 %496
    %498 = vrot.lane.b32.xlu0 %v405, 70
    %v499 = vpop.permute.xlu0 %498
    %500 = vrot.lane.b32.xlu0 %v406, 70
    %v501 = vpop.permute.xlu0 %500
    %507 = vrot.lane.b32.xlu0 %v402, 80
    %v508 = vpop.permute.xlu0 %507
    %509 = vrot.lane.b32.xlu0 %v403, 80
    %v510 = vpop.permute.xlu0 %509
    %511 = vrot.lane.b32.xlu0 %v406, 80
    %v512 = vpop.permute.xlu0 %511
    %513 = vrot.lane.b32.xlu0 %v407, 80
    %v514 = vpop.permute.xlu0 %513
    %v519 = vsel %vm235, %v392, %v413
    %v520 = vsel %vm235, %v393, %v415
    %v521 = vsel %vm235, %v396, %v417
    %v522 = vsel %vm235, %v397, %v419
    %vm523 = vcmask 162816
    %v524 = vsel %vm523, %v519, %v427
    %v525 = vsel %vm523, %v520, %v429
    %v526 = vsel %vm523, %v521, %v431
    %v527 = vsel %vm523, %v522, %v433
    %vm528 = vcmask 244736
    %v529 = vsel %vm528, %v524, %v442
    %v530 = vsel %vm528, %v525, %v444
    %v531 = vsel %vm528, %v526, %v446
    %v532 = vsel %vm528, %v527, %v448
    %vm533 = vcmask 326656
    %v534 = vsel %vm533, %v529, %v455
    %v535 = vsel %vm533, %v530, %v457
    %v536 = vsel %vm533, %v531, %v459
    %v537 = vsel %vm533, %v532, %v461
    %vm538 = vcmask 408576
    %v539 = vsel %vm538, %v534, %v468
    %v540 = vsel %vm538, %v535, %v470
    %v541 = vsel %vm538, %v536, %v472
    %v542 = vsel %vm538, %v537, %v474
    %vm543 = vcmask 490496
    %v544 = vsel %vm543, %v539, %v482
    %v545 = vsel %vm543, %v540, %v484
    %v546 = vsel %vm543, %v541, %v486
    %v547 = vsel %vm543, %v542, %v488
    %vm548 = vcmask 572416
    %v549 = vsel %vm548, %v544, %v495
    %v550 = vsel %vm548, %v545, %v497
    %v551 = vsel %vm548, %v546, %v499
    %v552 = vsel %vm548, %v547, %v501
    %vm553 = vcmask 654336
    %v554 = vsel %vm553, %v549, %v508
    %v555 = vsel %vm553, %v550, %v510
    %v556 = vsel %vm553, %v551, %v512
    %v557 = vsel %vm553, %v552, %v514
    %v558 = vld [vmem:[%s1 + $0x10] sm:$0xff]
    %v559 = vld [vmem:[%s1 + $0x18] sm:$0xff]
    %v560 = vld [vmem:[%s1 + $0x20] sm:$0xff]
    %v561 = vld [vmem:[%s1 + $0x28] sm:$0xff]
    %v562 = vld [vmem:[%s1 + $0x30] sm:$0xff]
    %v563 = vld [vmem:[%s1 + $0x38] sm:$0xff]
    %v564 = vld [vmem:[%s1 + $0x40] sm:$0xff]
    %v565 = vld [vmem:[%s1 + $0x48] sm:$0xff]
    %v566 = vld [vmem:[%s1 + $0x50] sm:$0xff]
    %v567 = vld [vmem:[%s1 + $0x58] sm:$0xff]
    %v568 = vld [vmem:[%s1 + $0x60] sm:$0xff]
    %v569 = vld [vmem:[%s1 + $0x68] sm:$0x3]
    %v570 = vld [vmem:[%s1 + $0xa3] sm:$0x1]
    %v571 = vlaneseq
    %v572 = vshrl.u32 %v571, 7
    %v573 = vsub.s32 0, %v572
    %v574 = vrot.slane %v570, %v573
    %vm575 = vcmask 736256
    %v577 = vsel %vm575, %v554, 0
    %v580 = vsel %vm575, %v555, 0
    %v583 = vsel %vm575, %v556, 0
    %v586 = vsel %vm575, %v557, 0
    %vm588 = vcmask 1041408
    %v590 = vsel %vm588, %v569, 0
    %592 = vmatprep.subr.mxu0 0.0
    %593 = vmatpush1.msra.mxu0 %v558
    %594 = vmatprep.subr.mxu0 0.0
    %595 = vmatpush1.msra.mxu0 %v559
    %596 = vmatprep.subr.mxu0 0.0
    %597 = vmatpush1.msra.mxu0 %v560
    %598 = vmatprep.subr.mxu0 0.0
    %599 = vmatpush1.msra.mxu0 %v561
    %600 = vmatprep.subr.mxu0 0.0
    %601 = vmatpush1.msra.mxu0 %v562
    %602 = vmatprep.subr.mxu0 0.0
    %603 = vmatpush1.msra.mxu0 %v563
    %604 = vmatprep.subr.mxu0 0.0
    %605 = vmatpush1.msra.mxu0 %v564
    %606 = vmatprep.subr.mxu0 0.0
    %607 = vmatpush1.msra.mxu0 %v565
    %608 = vmatprep.subr.mxu0 0.0
    %609 = vmatpush1.msra.mxu0 %v566
    %610 = vmatprep.subr.mxu0 0.0
    %611 = vmatpush1.msra.mxu0 %v567
    %612 = vmatprep.subr.mxu0 0.0
    %613 = vmatpush1.msra.mxu0 %v568
    %614 = vmatprep.subr.mxu0 0.0
    %615 = vmatpush1.msra.mxu0 %v590
    %616 = vmatprep.subr.mxu0 0.0
    %617 = vmatpush1.msra.mxu0 0.0
    %618 = vmatprep.subr.mxu0 0.0
    %619 = vmatpush1.msra.mxu0 0.0
    %620 = vmatprep.subr.mxu0 0.0
    %621 = vmatpush1.msra.mxu0 0.0
    %622 = vmatprep.subr.mxu0 0.0
    %623 = vmatpush1.msra.mxu0 0.0
    %624 = vmatprep.subr.mxu0 0.0
    %625 = vmatpush1.msra.mxu0 0.0
    %626 = vmatprep.subr.mxu0 0.0
    %627 = vmatpush1.msra.mxu0 0.0
    %628 = vmatprep.subr.mxu0 0.0
    %629 = vmatpush1.msra.mxu0 0.0
    %630 = vmatprep.subr.mxu0 0.0
    %631 = vmatpush1.msra.mxu0 0.0
    %632 = vmatprep.subr.mxu0 0.0
    %633 = vmatpush1.msra.mxu0 0.0
    %634 = vmatprep.subr.mxu0 0.0
    %635 = vmatpush1.msra.mxu0 0.0
    %636 = vmatprep.subr.mxu0 0.0
    %637 = vmatpush1.msra.mxu0 0.0
    %638 = vmatprep.subr.mxu0 0.0
    %639 = vmatpush1.msra.mxu0 0.0
    %640 = vmatprep.subr.mxu0 0.0
    %641 = vmatpush1.msra.mxu0 0.0
    %642 = vmatprep.subr.mxu0 0.0
    %643 = vmatpush1.msra.mxu0 0.0
    %644 = vmatprep.subr.mxu0 0.0
    %645 = vmatpush1.msra.mxu0 0.0
    %646 = vmatprep.subr.mxu0 0.0
    %647 = vmatpush1.msra.mxu0 0.0
    %648 = vmatprep.subr.mxu0 0.0
    %649 = vmatpush1.msra.mxu0 0.0
    %650 = vmatprep.subr.mxu0 0.0
    %651 = vmatpush1.msra.mxu0 0.0
    %652 = vmatprep.subr.mxu0 0.0
    %653 = vmatpush1.msra.mxu0 0.0
    %654 = vmatprep.subr.mxu0 0.0
    %655 = vmatpush1.msra.mxu0 0.0
    %656 = vmatprep.mubr.f32.mxu0 0.0
    %657 = vmatmul.mubr.f32.gmra.mrb[0].mxu0 %v577
    %v658 = vpop.f32.mrb[0].mxu0
    %v659 = vadd.f32 %v574, %v658
    %v660 = vpop.f32.mrb[0].mxu0
    %661 = vmatprep.mubr.f32.mxu0 0.0
    %662 = vmatmul.mubr.f32.gmra.mrb[0].mxu0 %v580
    %v663 = vpop.f32.mrb[0].mxu0
    %v664 = vadd.f32 %v574, %v663
    %v665 = vpop.f32.mrb[0].mxu0
    %666 = vmatprep.mubr.f32.mxu0 0.0
    %667 = vmatmul.mubr.f32.gmra.mrb[0].mxu0 %v583
    %v668 = vpop.f32.mrb[0].mxu0
    %v669 = vadd.f32 %v574, %v668
    %v670 = vpop.f32.mrb[0].mxu0
    %671 = vmatprep.mubr.f32.mxu0 0.0
    %672 = vmatmul.mubr.f32.gmra.mrb[0].mxu0 %v586
    %v673 = vpop.f32.mrb[0].mxu0
    %v674 = vadd.f32 %v574, %v673
    %v675 = vpop.f32.mrb[0].mxu0
    %676 = vdwg.mxu0
    %v677 = vld [vmem:[%s1 + $0xa4] sm:$0x1]
    %v678 = vld [vmem:[%s1 + $0xa5] sm:$0x1]
    %v679 = vsel %vm523, %v659, 0.0
    %v680 = vsel %vm523, %v664, 0.0
    %v681 = vadd.f32 %v679, %v680
    %v682 = vsel %vm523, %v669, 0.0
    %v683 = vadd.f32 %v681, %v682
    %v684 = vsel %vm523, %v674, 0.0
    %v685 = vadd.f32 %v683, %v684
    %v686 = vrot.slane %v685, 4
    %v687 = vadd.f32 %v685, %v686
    %v688 = vrot.slane %v687, 2
    %v689 = vadd.f32 %v687, %v688
    %v690 = vrot.slane %v689, 1
    %v691 = vadd.f32 %v689, %v690
    %v692 = vmul.f32 %v691, 0.03125
    %v693 = vmul.f32 %v659, %v659
    %v694 = vmul.f32 %v664, %v664
    %v695 = vmul.f32 %v669, %v669
    %v696 = vmul.f32 %v674, %v674
    %v697 = vsel %vm523, %v693, 0.0
    %v698 = vsel %vm523, %v694, 0.0
    %v699 = vadd.f32 %v697, %v698
    %v700 = vsel %vm523, %v695, 0.0
    %v701 = vadd.f32 %v699, %v700
    %v702 = vsel %vm523, %v696, 0.0
    %v703 = vadd.f32 %v701, %v702
    %v704 = vrot.slane %v703, 4
    %v705 = vadd.f32 %v703, %v704
    %v706 = vrot.slane %v705, 2
    %v707 = vadd.f32 %v705, %v706
    %v708 = vrot.slane %v707, 1
    %v709 = vadd.f32 %v707, %v708
    %v710 = vmul.f32 %v709, 0.03125
    %v711 = vmul.f32 %v692, %v692
    %v712 = vsub.f32 %v710, %v711
    %v713 = vmax.f32 %v712, 0.0
    %v714 = vadd.f32 %v713, 1e-05
    %v715 = vrsqrt.pop %v714
    %v716 = vmul.f32 %v677, %v715
    %v717 = vlaneseq
    %v718 = vshrl.u32 %v717, 7
    %v719 = vsub.s32 0, %v718
    %v720 = vrot.slane %v716, %v719
    %v721 = vmul.f32 %v659, %v720
    %v722 = vmul.f32 %v664, %v720
    %v723 = vmul.f32 %v669, %v720
    %v724 = vmul.f32 %v674, %v720
    %v725 = vmul.f32 %v692, %v716
    %v726 = vsub.f32 %v678, %v725
    %v727 = vlaneseq
    %v728 = vshrl.u32 %v727, 7
    %v729 = vsub.s32 0, %v728
    %v730 = vrot.slane %v726, %v729
    %v731 = vadd.f32 %v721, %v730
    %v732 = vadd.f32 %v722, %v730
    %v733 = vadd.f32 %v723, %v730
    %v734 = vadd.f32 %v724, %v730
    %v735 = vmax.f32 %v731, %v732
    %v736 = vmax.f32 %v733, %v734
    %v737 = vmax.f32 %v735, %v736
    %v738 = vld [vmem:[%s1 + $0x70] sm:$0xff]
    %v739 = vld [vmem:[%s1 + $0x78] sm:$0xff]
    %v740 = vld [vmem:[%s1 + $0x80] sm:$0xf]
    %v741 = vld [vmem:[%s1 + $0xa6] sm:$0x1]
    %v742 = vlaneseq
    %v743 = vshrl.u32 %v742, 7
    %v744 = vsub.s32 0, %v743
    %v745 = vrot.slane %v741, %v744
    %v747 = vsel %vm523, %v737, 0
    %v750 = vsel %vm84, %v740, 0
    %752 = vmatprep.subr.mxu0 0.0
    %753 = vmatpush1.msra.mxu0 %v738
    %754 = vmatprep.subr.mxu0 0.0
    %755 = vmatpush1.msra.mxu0 %v739
    %756 = vmatprep.subr.mxu0 0.0
    %757 = vmatpush1.msra.mxu0 %v750
    %758 = vmatprep.subr.mxu0 0.0
    %759 = vmatpush1.msra.mxu0 0.0
    %760 = vmatprep.subr.mxu0 0.0
    %761 = vmatpush1.msra.mxu0 0.0
    %762 = vmatprep.subr.mxu0 0.0
    %763 = vmatpush1.msra.mxu0 0.0
    %764 = vmatprep.subr.mxu0 0.0
    %765 = vmatpush1.msra.mxu0 0.0
    %766 = vmatprep.subr.mxu0 0.0
    %767 = vmatpush1.msra.mxu0 0.0
    %768 = vmatprep.subr.mxu0 0.0
    %769 = vmatpush1.msra.mxu0 0.0
    %770 = vmatprep.subr.mxu0 0.0
    %771 = vmatpush1.msra.mxu0 0.0
    %772 = vmatprep.subr.mxu0 0.0
    %773 = vmatpush1.msra.mxu0 0.0
    %774 = vmatprep.subr.mxu0 0.0
    %775 = vmatpush1.msra.mxu0 0.0
    %776 = vmatprep.subr.mxu0 0.0
    %777 = vmatpush1.msra.mxu0 0.0
    %778 = vmatprep.subr.mxu0 0.0
    %779 = vmatpush1.msra.mxu0 0.0
    %780 = vmatprep.subr.mxu0 0.0
    %781 = vmatpush1.msra.mxu0 0.0
    %782 = vmatprep.subr.mxu0 0.0
    %783 = vmatpush1.msra.mxu0 0.0
    %784 = vmatprep.subr.mxu0 0.0
    %785 = vmatpush1.msra.mxu0 0.0
    %786 = vmatprep.subr.mxu0 0.0
    %787 = vmatpush1.msra.mxu0 0.0
    %788 = vmatprep.subr.mxu0 0.0
    %789 = vmatpush1.msra.mxu0 0.0
    %790 = vmatprep.subr.mxu0 0.0
    %791 = vmatpush1.msra.mxu0 0.0
    %792 = vmatprep.subr.mxu0 0.0
    %793 = vmatpush1.msra.mxu0 0.0
    %794 = vmatprep.subr.mxu0 0.0
    %795 = vmatpush1.msra.mxu0 0.0
    %796 = vmatprep.subr.mxu0 0.0
    %797 = vmatpush1.msra.mxu0 0.0
    %798 = vmatprep.subr.mxu0 0.0
    %799 = vmatpush1.msra.mxu0 0.0
    %800 = vmatprep.subr.mxu0 0.0
    %801 = vmatpush1.msra.mxu0 0.0
    %802 = vmatprep.subr.mxu0 0.0
    %803 = vmatpush1.msra.mxu0 0.0
    %804 = vmatprep.subr.mxu0 0.0
    %805 = vmatpush1.msra.mxu0 0.0
    %806 = vmatprep.subr.mxu0 0.0
    %807 = vmatpush1.msra.mxu0 0.0
    %808 = vmatprep.subr.mxu0 0.0
    %809 = vmatpush1.msra.mxu0 0.0
    %810 = vmatprep.subr.mxu0 0.0
    %811 = vmatpush1.msra.mxu0 0.0
    %812 = vmatprep.subr.mxu0 0.0
    %813 = vmatpush1.msra.mxu0 0.0
    %814 = vmatprep.subr.mxu0 0.0
    %815 = vmatpush1.msra.mxu0 0.0
    %816 = vmatprep.mubr.f32.mxu0 0.0
    %817 = vmatmul.mubr.f32.gmra.mrb[0].mxu0 %v747
    %v818 = vpop.f32.mrb[0].mxu0
    %v819 = vadd.f32 %v745, %v818
    %v820 = vpop.f32.mrb[0].mxu0
    %821 = vdwg.mxu0
    %v822 = vld [vmem:[%s1 + $0xa7] sm:$0x1]
    %v823 = vld [vmem:[%s1 + $0xa8] sm:$0x1]
    %v824 = vsel %vm523, %v819, 0.0
    %v825 = vrot.slane %v824, 4
    %v826 = vadd.f32 %v824, %v825
    %v827 = vrot.slane %v826, 2
    %v828 = vadd.f32 %v826, %v827
    %v829 = vrot.slane %v828, 1
    %v830 = vadd.f32 %v828, %v829
    %v831 = vmul.f32 %v830, 0.125
    %v832 = vmul.f32 %v819, %v819
    %v833 = vsel %vm523, %v832, 0.0
    %v834 = vrot.slane %v833, 4
    %v835 = vadd.f32 %v833, %v834
    %v836 = vrot.slane %v835, 2
    %v837 = vadd.f32 %v835, %v836
    %v838 = vrot.slane %v837, 1
    %v839 = vadd.f32 %v837, %v838
    %v840 = vmul.f32 %v839, 0.125
    %v841 = vmul.f32 %v831, %v831
    %v842 = vsub.f32 %v840, %v841
    %v843 = vmax.f32 %v842, 0.0
    %v844 = vadd.f32 %v843, 1e-05
    %v845 = vrsqrt.pop %v844
    %v846 = vmul.f32 %v822, %v845
    %v847 = vlaneseq
    %v848 = vshrl.u32 %v847, 7
    %v849 = vsub.s32 0, %v848
    %v850 = vrot.slane %v846, %v849
    %v851 = vmul.f32 %v819, %v850
    %v852 = vmul.f32 %v831, %v846
    %v853 = vsub.f32 %v823, %v852
    %v854 = vlaneseq
    %v855 = vshrl.u32 %v854, 7
    %v856 = vsub.s32 0, %v855
    %v857 = vrot.slane %v853, %v856
    %v858 = vadd.f32 %v851, %v857
    %v859 = vmul.f32 %v858, 0.01
    %v860 = vmax.f32 %v858, %v859
    %v861 = vld [vmem:[%s1 + $0x88] sm:$0xff]
    %v862 = vld [vmem:[%s1 + $0x90] sm:$0xff]
    %v863 = vld [vmem:[%s1 + $0x98] sm:$0xf]
    %v864 = vld [vmem:[%s1 + $0xa9] sm:$0x1]
    %v865 = vlaneseq
    %v866 = vshrl.u32 %v865, 7
    %v867 = vsub.s32 0, %v866
    %v868 = vrot.slane %v864, %v867
    %v870 = vsel %vm523, %v860, 0
    %v873 = vsel %vm84, %v863, 0
    %875 = vmatprep.subr.mxu0 0.0
    %876 = vmatpush1.msra.mxu0 %v861
    %877 = vmatprep.subr.mxu0 0.0
    %878 = vmatpush1.msra.mxu0 %v862
    %879 = vmatprep.subr.mxu0 0.0
    %880 = vmatpush1.msra.mxu0 %v873
    %881 = vmatprep.subr.mxu0 0.0
    %882 = vmatpush1.msra.mxu0 0.0
    %883 = vmatprep.subr.mxu0 0.0
    %884 = vmatpush1.msra.mxu0 0.0
    %885 = vmatprep.subr.mxu0 0.0
    %886 = vmatpush1.msra.mxu0 0.0
    %887 = vmatprep.subr.mxu0 0.0
    %888 = vmatpush1.msra.mxu0 0.0
    %889 = vmatprep.subr.mxu0 0.0
    %890 = vmatpush1.msra.mxu0 0.0
    %891 = vmatprep.subr.mxu0 0.0
    %892 = vmatpush1.msra.mxu0 0.0
    %893 = vmatprep.subr.mxu0 0.0
    %894 = vmatpush1.msra.mxu0 0.0
    %895 = vmatprep.subr.mxu0 0.0
    %896 = vmatpush1.msra.mxu0 0.0
    %897 = vmatprep.subr.mxu0 0.0
    %898 = vmatpush1.msra.mxu0 0.0
    %899 = vmatprep.subr.mxu0 0.0
    %900 = vmatpush1.msra.mxu0 0.0
    %901 = vmatprep.subr.mxu0 0.0
    %902 = vmatpush1.msra.mxu0 0.0
    %903 = vmatprep.subr.mxu0 0.0
    %904 = vmatpush1.msra.mxu0 0.0
    %905 = vmatprep.subr.mxu0 0.0
    %906 = vmatpush1.msra.mxu0 0.0
    %907 = vmatprep.subr.mxu0 0.0
    %908 = vmatpush1.msra.mxu0 0.0
    %909 = vmatprep.subr.mxu0 0.0
    %910 = vmatpush1.msra.mxu0 0.0
    %911 = vmatprep.subr.mxu0 0.0
    %912 = vmatpush1.msra.mxu0 0.0
    %913 = vmatprep.subr.mxu0 0.0
    %914 = vmatpush1.msra.mxu0 0.0
    %915 = vmatprep.subr.mxu0 0.0
    %916 = vmatpush1.msra.mxu0 0.0
    %917 = vmatprep.subr.mxu0 0.0
    %918 = vmatpush1.msra.mxu0 0.0
    %919 = vmatprep.subr.mxu0 0.0
    %920 = vmatpush1.msra.mxu0 0.0
    %921 = vmatprep.subr.mxu0 0.0
    %922 = vmatpush1.msra.mxu0 0.0
    %923 = vmatprep.subr.mxu0 0.0
    %924 = vmatpush1.msra.mxu0 0.0
    %925 = vmatprep.subr.mxu0 0.0
    %926 = vmatpush1.msra.mxu0 0.0
    %927 = vmatprep.subr.mxu0 0.0
    %928 = vmatpush1.msra.mxu0 0.0
    %929 = vmatprep.subr.mxu0 0.0
    %930 = vmatpush1.msra.mxu0 0.0
    %931 = vmatprep.subr.mxu0 0.0
    %932 = vmatpush1.msra.mxu0 0.0
    %933 = vmatprep.subr.mxu0 0.0
    %934 = vmatpush1.msra.mxu0 0.0
    %935 = vmatprep.subr.mxu0 0.0
    %936 = vmatpush1.msra.mxu0 0.0
    %937 = vmatprep.subr.mxu0 0.0
    %938 = vmatpush1.msra.mxu0 0.0
    %939 = vmatprep.mubr.f32.mxu0 0.0
    %940 = vmatmul.mubr.f32.gmra.mrb[0].mxu0 %v870
    %v941 = vpop.f32.mrb[0].mxu0
    %v942 = vadd.f32 %v868, %v941
    %v943 = vpop.f32.mrb[0].mxu0
    %944 = vdwg.mxu0
    %vm945 = vcmask 48128
    %946 = vst.msk [vmem:[#allocation2] sm:$0xff] %vm945, %v942
    // Predicated region
    $region10: #{taxi_simple_cnn.1} parent=1 // pred_check
      _
    $region11: #{taxi_simple_cnn.1} parent=1 // pred_check_branch
      %948 = sbr.rel (0) target = $region13
    $region12: #{taxi_simple_cnn.1} parent=1 // pred_region
      %s950 = ssub.s32 128, 128
      %951 = vsyncadd [#allocation3], %s950
      %s953 = sshll.u32 [#allocation2], 4
      %s954 = int_to_ptr.vmem [resolvable:$true] %s953
      %956 = dma.vmem_to_hbm [thread:$0]  %s954, 128, %s2, [#allocation3]
    $region13: #{taxi_simple_cnn.1} parent=1 // pred_fallthru
      _
    // Predicated region
    $region14: #{taxi_simple_cnn.1} parent=1 // pred_check
      _
    $region15: #{taxi_simple_cnn.1} parent=1 // pred_check_branch
      %958 = sbr.rel (0) target = $region17
    $region16: #{taxi_simple_cnn.1} parent=1 // pred_region
      %959 = dma.done [#allocation3], 128
    $region17: #{taxi_simple_cnn.1} parent=1 // pred_fallthru
      _
    %960 = vsyncpa [#allocation3], 1

</llo_original>
